<compile_context>
chip_gen: v7x
topology: tpu7x:2x2x1
jax: 0.10.0
libtpu: 0.0.40
codegen_flags: <defaults>
</compile_context>

<pallas_src>
import functools

import jax
import jax.numpy as jnp
from jax.experimental import pallas as pl
from jax.experimental.pallas import tpu as pltpu

_LANES = 128      # vreg lane width (last dim)
_SUBLANES = 8     # vreg sublane count (second-last dim)


def _round_up(v, m):
    return ((v + m - 1) // m) * m


# ----------------------------- kernels ------------------------------------ #

def _kernel_shortcut(x_ref, w0_ref, b0_ref, w1_ref, b1_ref, ws_ref, o_ref, *,
                     mxu_dtype):
    x = x_ref[...].astype(jnp.float32)
    # Shortcut matmul first: x's live range ends at the relu below instead of
    # spanning the whole net/dx chain (less vreg pressure / spill).
    x_s = jnp.dot(x.astype(mxu_dtype), ws_ref[...],
                  preferred_element_type=jnp.float32)              # bias-free
    h = jnp.maximum(x, 0.0)                                        # relu(x), f32
    net = jnp.dot(h.astype(mxu_dtype), w0_ref[...],
                  preferred_element_type=jnp.float32) + b0_ref[...]
    net = jnp.maximum(net, 0.0)                                    # relu(net), f32
    dx = jnp.dot(net.astype(mxu_dtype), w1_ref[...],
                 preferred_element_type=jnp.float32) + b1_ref[...]
    o_ref[...] = (x_s + dx).astype(o_ref.dtype)


def _kernel_identity(x_ref, w0_ref, b0_ref, w1_ref, b1_ref, o_ref, *, mxu_dtype):
    x = x_ref[...].astype(jnp.float32)
    h = jnp.maximum(x, 0.0)
    net = jnp.dot(h.astype(mxu_dtype), w0_ref[...],
                  preferred_element_type=jnp.float32) + b0_ref[...]
    net = jnp.maximum(net, 0.0)
    dx = jnp.dot(net.astype(mxu_dtype), w1_ref[...],
                 preferred_element_type=jnp.float32) + b1_ref[...]
    o_ref[...] = (x + dx).astype(o_ref.dtype)                      # f32 residual add


# ----------------------------- wrapper ------------------------------------ #

def resnet_block_fc(x, params, *, tile_n=512, mxu_dtype=jnp.bfloat16):
    """Forward pass. x: (N, size_in).

    params (weights pre-transposed to (in, out)):
      w0: (size_in, size_h)   b0: (1, size_h)
      w1: (size_h, size_out)  b1: (1, size_out)
      ws: (size_in, size_out) -- only when size_in != size_out

    tile_n:    rows per grid step (rounded to a multiple of 8 sublanes and
               capped so the grid has >= 2 steps when there is enough work).
    mxu_dtype: dtype fed to the MXU (bfloat16 default, float32 for exact);
               accumulation and all elementwise math stay float32.
    """
    n, size_in = x.shape
    w0, b0, w1, b1 = params["w0"], params["b0"], params["w1"], params["b1"]
    ws = params.get("ws")
    size_h = w0.shape[1]
    size_out = w1.shape[1]

    # Lane-pad feature dims only when not already 128-aligned (zero padding is
    # exact: relu(0)=0, zero weight rows/cols contribute 0).  No row padding.
    in_p = _round_up(size_in, _LANES)
    h_p = _round_up(size_h, _LANES)
    out_p = _round_up(size_out, _LANES)

    tile_n = max(_SUBLANES, _round_up(tile_n, _SUBLANES))
    tile_n = min(tile_n, max(_SUBLANES, _round_up(pl.cdiv(n, 2), _SUBLANES)))
    grid = (pl.cdiv(n, tile_n),)

    def pad_cols(a, cols, dtype):
        a = jnp.asarray(a, dtype)
        return a if a.shape[1] == cols else jnp.pad(a, ((0, 0), (0, cols - a.shape[1])))

    def pad2(a, rows, cols, dtype):
        a = jnp.asarray(a, dtype)
        pr, pc = rows - a.shape[0], cols - a.shape[1]
        return a if (pr == 0 and pc == 0) else jnp.pad(a, ((0, pr), (0, pc)))

    x_p = pad_cols(x, in_p, x.dtype)              # no row pad / no copy if aligned
    w0_p = pad2(w0, in_p, h_p, mxu_dtype)
    b0_p = pad2(b0, 1, h_p, jnp.float32)
    w1_p = pad2(w1, h_p, out_p, mxu_dtype)
    b1_p = pad2(b1, 1, out_p, jnp.float32)

    # Activation / output tiles march with the grid; weights stay VMEM-resident
    # and are single-buffered (constant index_map -> DMA'd only once).
    x_spec = pl.BlockSpec((tile_n, in_p), lambda i: (i, 0))
    out_spec = pl.BlockSpec((tile_n, out_p), lambda i: (i, 0))

    def resident(shape):
        return pl.BlockSpec(shape, lambda i: (0, 0), pipeline_mode=pl.Buffered(1))

    out_dtype = x.dtype
    x_item = jnp.dtype(x_p.dtype).itemsize
    out_item = jnp.dtype(out_dtype).itemsize
    w_item = jnp.dtype(mxu_dtype).itemsize
    n_wts = in_p * h_p + h_p * out_p + (in_p * out_p if ws is not None else 0)

    # Explicit VMEM budget: 2x act tiles + 2x out tiles + single-buffered
    # weights/biases + f32 intermediates (x, h, net, dx, x_s) + 25% headroom.
    vmem_needed = (2 * tile_n * in_p * x_item
                   + 2 * tile_n * out_p * out_item
                   + n_wts * w_item + (h_p + out_p) * 4
                   + tile_n * (2 * in_p + h_p + 2 * out_p) * 4)
    vmem_limit = int(min(max(vmem_needed * 1.25, 4 * 1024 * 1024),
                         64 * 1024 * 1024))

    flops = 2 * n * (in_p * h_p + h_p * out_p
                     + (in_p * out_p if ws is not None else 0))
    bytes_accessed = (n * in_p * x_item + n * out_p * out_item    # streamed x, out
                      + n_wts * w_item + (h_p + out_p) * 4)       # weights once
    cost = pl.CostEstimate(flops=flops, transcendentals=0,
                           bytes_accessed=bytes_accessed)
    cparams = pltpu.CompilerParams(dimension_semantics=("parallel",),
                                   vmem_limit_bytes=vmem_limit)
    out_shape = jax.ShapeDtypeStruct((n, out_p), out_dtype)

    if ws is not None:
        ws_p = pad2(ws, in_p, out_p, mxu_dtype)
        out = pl.pallas_call(
            functools.partial(_kernel_shortcut, mxu_dtype=mxu_dtype),
            out_shape=out_shape,
            grid=grid,
            in_specs=[x_spec,
                      resident((in_p, h_p)), resident((1, h_p)),
                      resident((h_p, out_p)), resident((1, out_p)),
                      resident((in_p, out_p))],
            out_specs=out_spec,
            compiler_params=cparams,
            cost_estimate=cost,
        )(x_p, w0_p, b0_p, w1_p, b1_p, ws_p)
    else:
        out = pl.pallas_call(
            functools.partial(_kernel_identity, mxu_dtype=mxu_dtype),
            out_shape=out_shape,
            grid=grid,
            in_specs=[x_spec,
                      resident((in_p, h_p)), resident((1, h_p)),
                      resident((h_p, out_p)), resident((1, out_p))],
            out_specs=out_spec,
            compiler_params=cparams,
            cost_estimate=cost,
        )(x_p, w0_p, b0_p, w1_p, b1_p)

    # Slice only when column padding was actually applied (rows are already n).
    return out if out_p == size_out else out[:, :size_out]


# ----------------------------- init / reference ---------------------------- #

def init_params(key, size_in, size_out=None, size_h=None):
    """Synthetic init mirroring nn.Linear defaults (fc_1.weight zero-initialized).
    Weights are stored pre-transposed to (in, out)."""
    if size_out is None:
        size_out = size_in
    if size_h is None:
        size_h = min(size_in, size_out)

    k0, k1, k2, k3 = jax.random.split(key, 4)
    bound0 = 1.0 / jnp.sqrt(size_in)
    bound1 = 1.0 / jnp.sqrt(size_h)

    params = {
        "w0": jax.random.uniform(k0, (size_in, size_h), jnp.float32, -bound0, bound0),
        "b0": jax.random.uniform(k1, (1, size_h), jnp.float32, -bound0, bound0),
        "w1": jnp.zeros((size_h, size_out), jnp.float32),   # nn.init.zeros_
        "b1": jax.random.uniform(k2, (1, size_out), jnp.float32, -bound1, bound1),
    }
    if size_in != size_out:
        params["ws"] = jax.random.uniform(k3, (size_in, size_out), jnp.float32,
                                          -bound0, bound0)
    return params


def resnet_block_fc_ref(x, params):
    """Pure-JAX reference of the PyTorch forward (f32)."""
    h = jnp.maximum(x, 0.0)
    net = h @ params["w0"] + params["b0"]
    dx = jnp.maximum(net, 0.0) @ params["w1"] + params["b1"]
    x_s = x @ params["ws"] if "ws" in params else x
    return x_s + dx


# ----------------------------- demo ---------------------------------------- #

if __name__ == "__main__":
    key = jax.random.PRNGKey(0)
    kx, kp, kx2 = jax.random.split(key, 3)

    # Small shapes consistent with the module: size_h = min(size_in, size_out).
    batch = 8
    size_in, size_out, size_h = 32, 64, 32

    x = jax.random.normal(kx, (batch, size_in), jnp.float32)
    params = init_params(kp, size_in, size_out, size_h)
    ref = resnet_block_fc_ref(x, params)

    # Exact-f32 path (shortcut branch), tight tolerance.
    out_f32 = jax.block_until_ready(
        resnet_block_fc(x, params, mxu_dtype=jnp.float32))
    assert out_f32.shape == (batch, size_out)
    assert jnp.allclose(out_f32, ref, atol=1e-5, rtol=1e-5), "shortcut-path mismatch"

    # Identity-shortcut path (size_in == size_out), exact f32, multi-step row
    # grid with a ragged last block (20 rows, 8-row tiles -> 3 steps).
    batch2 = 20
    x2 = jax.random.normal(kx2, (batch2, size_in), jnp.float32)
    params_id = init_params(kp, size_in, size_in, size_h)
    out_id = jax.block_until_ready(
        resnet_block_fc(x2, params_id, tile_n=8, mxu_dtype=jnp.float32))
    ref_id = resnet_block_fc_ref(x2, params_id)
    assert out_id.shape == (batch2, size_in)
    assert jnp.allclose(out_id, ref_id, atol=1e-5, rtol=1e-5), "identity-path mismatch"

    # Default bf16-MXU path (f32 accumulation), loose tolerance.
    out_bf16 = jax.block_until_ready(resnet_block_fc(x, params))
    assert jnp.allclose(out_bf16, ref, atol=5e-2, rtol=5e-2), "bf16-path mismatch"

    print("KERNEL_OK")
</pallas_src>

<mosaic_0001>
module attributes {stable_mosaic.version = 11 : i64} {
  func.func @_kernel_shortcut(%arg0: i32, %arg1: memref<8x128xf32, #tpu.memory_space<vmem>>, %arg2: memref<128x128xf32, #tpu.memory_space<vmem>>, %arg3: memref<1x128xf32, #tpu.memory_space<vmem>>, %arg4: memref<128x128xf32, #tpu.memory_space<vmem>>, %arg5: memref<1x128xf32, #tpu.memory_space<vmem>>, %arg6: memref<128x128xf32, #tpu.memory_space<vmem>>, %arg7: memref<8x128xf32, #tpu.memory_space<vmem>>) attributes {dimension_semantics = [#tpu.dimension_semantics<parallel>], iteration_bounds = array<i64: 1>, scalar_prefetch = 0 : i64, scratch_operands = 0 : i64, tpu.core_type = #tpu.core_type<tc>, window_params = [{transform_indices = @transform_0, window_bounds = array<i64: 8, 128>}, {pipeline_mode = #tpu.pipeline_mode<synchronous>, transform_indices = @transform_1, window_bounds = array<i64: 128, 128>}, {pipeline_mode = #tpu.pipeline_mode<synchronous>, transform_indices = @transform_2, window_bounds = array<i64: 1, 128>}, {pipeline_mode = #tpu.pipeline_mode<synchronous>, transform_indices = @transform_3, window_bounds = array<i64: 128, 128>}, {pipeline_mode = #tpu.pipeline_mode<synchronous>, transform_indices = @transform_4, window_bounds = array<i64: 1, 128>}, {pipeline_mode = #tpu.pipeline_mode<synchronous>, transform_indices = @transform_5, window_bounds = array<i64: 128, 128>}, {transform_indices = @transform_6, window_bounds = array<i64: 8, 128>}]} {
    %c0 = arith.constant 0 : index
    %c0_0 = arith.constant 0 : index
    %0 = vector.load %arg1[%c0, %c0_0] : memref<8x128xf32, #tpu.memory_space<vmem>>, vector<8x128xf32>
    %c0_1 = arith.constant 0 : index
    %c0_2 = arith.constant 0 : index
    %1 = vector.load %arg6[%c0_1, %c0_2] : memref<128x128xf32, #tpu.memory_space<vmem>>, vector<128x128xf32>
    %cst = arith.constant dense<0.000000e+00> : vector<8x128xf32>
    %2 = tpu.matmul %0, %1, %cst {dimension_numbers = #tpu.dot_dimension_numbers<[1], [0], [0], [1], [0, 0, 1, 1], [], []>} : vector<8x128xf32>, vector<128x128xf32>, vector<8x128xf32> -> vector<8x128xf32>
    %cst_3 = arith.constant 0.000000e+00 : f32
    %3 = vector.broadcast %cst_3 : f32 to vector<8x128xf32>
    %4 = arith.maximumf %0, %3 : vector<8x128xf32>
    %c0_4 = arith.constant 0 : index
    %c0_5 = arith.constant 0 : index
    %5 = vector.load %arg2[%c0_4, %c0_5] : memref<128x128xf32, #tpu.memory_space<vmem>>, vector<128x128xf32>
    %cst_6 = arith.constant dense<0.000000e+00> : vector<8x128xf32>
    %6 = tpu.matmul %4, %5, %cst_6 {dimension_numbers = #tpu.dot_dimension_numbers<[1], [0], [0], [1], [0, 0, 1, 1], [], []>} : vector<8x128xf32>, vector<128x128xf32>, vector<8x128xf32> -> vector<8x128xf32>
    %c0_7 = arith.constant 0 : index
    %c0_8 = arith.constant 0 : index
    %7 = vector.load %arg3[%c0_7, %c0_8] : memref<1x128xf32, #tpu.memory_space<vmem>>, vector<1x128xf32>
    %8 = vector.broadcast %7 : vector<1x128xf32> to vector<8x128xf32>
    %9 = arith.addf %6, %8 : vector<8x128xf32>
    %cst_9 = arith.constant 0.000000e+00 : f32
    %10 = vector.broadcast %cst_9 : f32 to vector<8x128xf32>
    %11 = arith.maximumf %9, %10 : vector<8x128xf32>
    %c0_10 = arith.constant 0 : index
    %c0_11 = arith.constant 0 : index
    %12 = vector.load %arg4[%c0_10, %c0_11] : memref<128x128xf32, #tpu.memory_space<vmem>>, vector<128x128xf32>
    %cst_12 = arith.constant dense<0.000000e+00> : vector<8x128xf32>
    %13 = tpu.matmul %11, %12, %cst_12 {dimension_numbers = #tpu.dot_dimension_numbers<[1], [0], [0], [1], [0, 0, 1, 1], [], []>} : vector<8x128xf32>, vector<128x128xf32>, vector<8x128xf32> -> vector<8x128xf32>
    %c0_13 = arith.constant 0 : index
    %c0_14 = arith.constant 0 : index
    %14 = vector.load %arg5[%c0_13, %c0_14] : memref<1x128xf32, #tpu.memory_space<vmem>>, vector<1x128xf32>
    %15 = vector.broadcast %14 : vector<1x128xf32> to vector<8x128xf32>
    %16 = arith.addf %13, %15 : vector<8x128xf32>
    %17 = arith.addf %2, %16 : vector<8x128xf32>
    %c0_15 = arith.constant 0 : index
    %c0_16 = arith.constant 0 : index
    %18 = vector.load %arg7[%c0_15, %c0_16] : memref<8x128xf32, #tpu.memory_space<vmem>>, vector<8x128xf32>
    tpu.vector_store %arg7[%c0_15, %c0_16], %17 {strides = array<i32>} : memref<8x128xf32, #tpu.memory_space<vmem>>, vector<8x128xf32>,
    return
  }
  func.func @transform_0(%arg0: i32) -> (i32, i32) {
    %c0_i32 = arith.constant 0 : i32
    %c0_i32_0 = arith.constant 0 : i32
    return %arg0, %c0_i32 : i32, i32
  }
  func.func @transform_1(%arg0: i32) -> (i32, i32) {
    %c0_i32 = arith.constant 0 : i32
    %c0_i32_0 = arith.constant 0 : i32
    %c0_i32_1 = arith.constant 0 : i32
    return %c0_i32, %c0_i32_0 : i32, i32
  }
  func.func @transform_2(%arg0: i32) -> (i32, i32) {
    %c0_i32 = arith.constant 0 : i32
    %c0_i32_0 = arith.constant 0 : i32
    %c0_i32_1 = arith.constant 0 : i32
    return %c0_i32, %c0_i32_0 : i32, i32
  }
  func.func @transform_3(%arg0: i32) -> (i32, i32) {
    %c0_i32 = arith.constant 0 : i32
    %c0_i32_0 = arith.constant 0 : i32
    %c0_i32_1 = arith.constant 0 : i32
    return %c0_i32, %c0_i32_0 : i32, i32
  }
  func.func @transform_4(%arg0: i32) -> (i32, i32) {
    %c0_i32 = arith.constant 0 : i32
    %c0_i32_0 = arith.constant 0 : i32
    %c0_i32_1 = arith.constant 0 : i32
    return %c0_i32, %c0_i32_0 : i32, i32
  }
  func.func @transform_5(%arg0: i32) -> (i32, i32) {
    %c0_i32 = arith.constant 0 : i32
    %c0_i32_0 = arith.constant 0 : i32
    %c0_i32_1 = arith.constant 0 : i32
    return %c0_i32, %c0_i32_0 : i32, i32
  }
  func.func @transform_6(%arg0: i32) -> (i32, i32) {
    %c0_i32 = arith.constant 0 : i32
    %c0_i32_0 = arith.constant 0 : i32
    return %arg0, %c0_i32 : i32, i32
  }
}

</mosaic_0001>

<llo_original>
// kernel: tpu_custom_call.1
$region0: #{tpu_custom_call.1}
  #allocation0 [shape = 'u32[]', space=smem, size = 0x4, offset = 0x4, fixed_abs, tag = 'smem constant byte address 0x4 - core index']
  #allocation1 [shape = 'u32[144,128]{1,0:T(1,128)}', space=vmem, size = 0x12000, scoped, tag = 'internal scratch']
  %s0 = inlined_call_operand.hbm [shape: f32[8,128], index: 0, kind: input, shape index: {}]
  %s1 = inlined_call_operand.hbm [shape: f32[128,128], index: 1, kind: input, shape index: {}]
  %s2 = inlined_call_operand.vmem [shape: f32[1,128], index: 2, kind: input, shape index: {}]
  %s3 = inlined_call_operand.hbm [shape: f32[128,128], index: 3, kind: input, shape index: {}]
  %s4 = inlined_call_operand.vmem [shape: f32[1,128], index: 4, kind: input, shape index: {}]
  %s5 = inlined_call_operand.hbm [shape: f32[128,128], index: 5, kind: input, shape index: {}]
  %s6 = inlined_call_operand.hbm [shape: f32[8,128], index: 6, kind: output, shape index: {}]
  %s7 = sld [smem:[#allocation0]]
  $region50: #{tpu_custom_call.1} parent=0
    _
  %s9 = ssub.s32 1, %s7
  %s10 = scalar_select 0, %s9, %s7
  $region1: #{tpu_custom_call.1} parent=0
    #allocation2 [shape = 'u8[4096]{0}', space=vmem, size = 0x1000, scoped, tag = 'input window, operand 0, single buffered']
    #allocation3 [shape = 's32[1]{0}', space=sflag, size = 0x4, scoped, tag = 'scoped memory for tpu_custom_call.1']
    #allocation4 [shape = 's32[1]{0}', space=sflag, size = 0x4, scoped, tag = 'scoped memory for tpu_custom_call.1']
    #allocation5 [shape = 'u8[65536]{0}', space=vmem, size = 0x10000, scoped, tag = 'input window, operand 1, single buffered']
    #allocation6 [shape = 's32[1]{0}', space=sflag, size = 0x4, scoped, tag = 'scoped memory for tpu_custom_call.1']
    #allocation7 [shape = 'u8[65536]{0}', space=vmem, size = 0x10000, scoped, tag = 'input window, operand 3, single buffered']
    #allocation8 [shape = 'u8[65536]{0}', space=vmem, size = 0x10000, scoped, tag = 'input window, operand 5, single buffered']
    #allocation9 [shape = 's32[1]{0}', space=sflag, size = 0x4, scoped, tag = 'scoped memory for tpu_custom_call.1']
    #allocation10 [shape = 'u8[4096]{0}', space=vmem, size = 0x1000, scoped, tag = 'output window, operand 0, single buffered']
    %11 = vsyncpa [#allocation3], 0
    %12 = vsyncpa [#allocation6], 0
    %13 = vsyncpa [#allocation9], 0
    %14 = vsyncpa [#allocation4], 0
    // Predicated region
    $region2: #{tpu_custom_call.1} parent=1 // pred_check
      _
    $region3: #{tpu_custom_call.1} parent=1 // pred_check_branch
      %16 = sbr.rel (0) target = $region5
    $region4: #{tpu_custom_call.1} parent=1 // pred_region
      %s18 = ssub.s32 128, 128
      %19 = vsyncadd [#allocation3], %s18
      %s21 = sshll.u32 [#allocation2], 4
      %s22 = int_to_ptr.vmem [resolvable:$true] %s21
      %24 = dma.hbm_to_vmem [thread:$0]  %s0, 128, %s22, [#allocation3]
    $region5: #{tpu_custom_call.1} parent=1 // pred_fallthru
      _
    // Predicated region
    $region6: #{tpu_custom_call.1} parent=1 // pred_check
      _
    $region7: #{tpu_custom_call.1} parent=1 // pred_check_branch
      %26 = sbr.rel (0) target = $region9
    $region8: #{tpu_custom_call.1} parent=1 // pred_region
      %s28 = ssub.s32 2048, 2048
      %29 = vsyncadd [#allocation6], %s28
      %s30 = sshll.u32 [#allocation5], 4
      %s31 = int_to_ptr.vmem [resolvable:$true] %s30
      %36 = dma.hbm_to_vmem [thread:$0]  %s1, 2048, %s31, [#allocation6], 128, 128, 8
    $region9: #{tpu_custom_call.1} parent=1 // pred_fallthru
      _
    // Predicated region
    $region10: #{tpu_custom_call.1} parent=1 // pred_check
      _
    $region11: #{tpu_custom_call.1} parent=1 // pred_check_branch
      %38 = sbr.rel (0) target = $region13
    $region12: #{tpu_custom_call.1} parent=1 // pred_region
      _
    $region13: #{tpu_custom_call.1} parent=1 // pred_fallthru
      _
    // Predicated region
    $region14: #{tpu_custom_call.1} parent=1 // pred_check
      _
    $region15: #{tpu_custom_call.1} parent=1 // pred_check_branch
      %40 = sbr.rel (0) target = $region17
    $region16: #{tpu_custom_call.1} parent=1 // pred_region
      %s42 = ssub.s32 2048, 2048
      %43 = vsyncadd [#allocation6], %s42
      %s44 = sshll.u32 [#allocation7], 4
      %s45 = int_to_ptr.vmem [resolvable:$true] %s44
      %50 = dma.hbm_to_vmem [thread:$0]  %s3, 2048, %s45, [#allocation6], 128, 128, 8
    $region17: #{tpu_custom_call.1} parent=1 // pred_fallthru
      _
    // Predicated region
    $region18: #{tpu_custom_call.1} parent=1 // pred_check
      _
    $region19: #{tpu_custom_call.1} parent=1 // pred_check_branch
      %52 = sbr.rel (0) target = $region21
    $region20: #{tpu_custom_call.1} parent=1 // pred_region
      _
    $region21: #{tpu_custom_call.1} parent=1 // pred_fallthru
      _
    // Predicated region
    $region22: #{tpu_custom_call.1} parent=1 // pred_check
      _
    $region23: #{tpu_custom_call.1} parent=1 // pred_check_branch
      %54 = sbr.rel (0) target = $region25
    $region24: #{tpu_custom_call.1} parent=1 // pred_region
      %s56 = ssub.s32 2048, 2048
      %57 = vsyncadd [#allocation9], %s56
      %s58 = sshll.u32 [#allocation8], 4
      %s59 = int_to_ptr.vmem [resolvable:$true] %s58
      %64 = dma.hbm_to_vmem [thread:$0]  %s5, 2048, %s59, [#allocation9], 128, 128, 8
    $region25: #{tpu_custom_call.1} parent=1 // pred_fallthru
      _
    // Predicated region
    $region26: #{tpu_custom_call.1} parent=1 // pred_check
      _
    $region27: #{tpu_custom_call.1} parent=1 // pred_check_branch
      %66 = sbr.rel (0) target = $region29
    $region28: #{tpu_custom_call.1} parent=1 // pred_region
      %67 = dma.done [#allocation3], 128
    $region29: #{tpu_custom_call.1} parent=1 // pred_fallthru
      _
    // Predicated region
    $region30: #{tpu_custom_call.1} parent=1 // pred_check
      _
    $region31: #{tpu_custom_call.1} parent=1 // pred_check_branch
      %69 = sbr.rel (0) target = $region33
    $region32: #{tpu_custom_call.1} parent=1 // pred_region
      %70 = dma.done [#allocation6], 2048
    $region33: #{tpu_custom_call.1} parent=1 // pred_fallthru
      _
    // Predicated region
    $region34: #{tpu_custom_call.1} parent=1 // pred_check
      _
    $region35: #{tpu_custom_call.1} parent=1 // pred_check_branch
      %72 = sbr.rel (0) target = $region37
    $region36: #{tpu_custom_call.1} parent=1 // pred_region
      %73 = dma.done [#allocation6], 2048
    $region37: #{tpu_custom_call.1} parent=1 // pred_fallthru
      _
    // Predicated region
    $region38: #{tpu_custom_call.1} parent=1 // pred_check
      _
    $region39: #{tpu_custom_call.1} parent=1 // pred_check_branch
      %75 = sbr.rel (0) target = $region41
    $region40: #{tpu_custom_call.1} parent=1 // pred_region
      %76 = dma.done [#allocation9], 2048
    $region41: #{tpu_custom_call.1} parent=1 // pred_fallthru
      _
    %v77 = vld [vmem:[#allocation2] sm:$0xff]
    %v78 = vld [vmem:[#allocation8] sm:$0xff]
    %v79 = vld [vmem:[#allocation8 + $0x8] sm:$0xff]
    %v80 = vld [vmem:[#allocation8 + $0x10] sm:$0xff]
    %v81 = vld [vmem:[#allocation8 + $0x18] sm:$0xff]
    %v82 = vld [vmem:[#allocation8 + $0x20] sm:$0xff]
    %v83 = vld [vmem:[#allocation8 + $0x28] sm:$0xff]
    %v84 = vld [vmem:[#allocation8 + $0x30] sm:$0xff]
    %v85 = vld [vmem:[#allocation8 + $0x38] sm:$0xff]
    %v86 = vld [vmem:[#allocation8 + $0x40] sm:$0xff]
    %v87 = vld [vmem:[#allocation8 + $0x48] sm:$0xff]
    %v88 = vld [vmem:[#allocation8 + $0x50] sm:$0xff]
    %v89 = vld [vmem:[#allocation8 + $0x58] sm:$0xff]
    %v90 = vld [vmem:[#allocation8 + $0x60] sm:$0xff]
    %v91 = vld [vmem:[#allocation8 + $0x68] sm:$0xff]
    %v92 = vld [vmem:[#allocation8 + $0x70] sm:$0xff]
    %v93 = vld [vmem:[#allocation8 + $0x78] sm:$0xff]
    %v94 = vmax.f32 %v77, 0.0
    %v95 = vld [vmem:[#allocation5] sm:$0xff]
    %v96 = vld [vmem:[#allocation5 + $0x8] sm:$0xff]
    %v97 = vld [vmem:[#allocation5 + $0x10] sm:$0xff]
    %v98 = vld [vmem:[#allocation5 + $0x18] sm:$0xff]
    %v99 = vld [vmem:[#allocation5 + $0x20] sm:$0xff]
    %v100 = vld [vmem:[#allocation5 + $0x28] sm:$0xff]
    %v101 = vld [vmem:[#allocation5 + $0x30] sm:$0xff]
    %v102 = vld [vmem:[#allocation5 + $0x38] sm:$0xff]
    %v103 = vld [vmem:[#allocation5 + $0x40] sm:$0xff]
    %v104 = vld [vmem:[#allocation5 + $0x48] sm:$0xff]
    %v105 = vld [vmem:[#allocation5 + $0x50] sm:$0xff]
    %v106 = vld [vmem:[#allocation5 + $0x58] sm:$0xff]
    %v107 = vld [vmem:[#allocation5 + $0x60] sm:$0xff]
    %v108 = vld [vmem:[#allocation5 + $0x68] sm:$0xff]
    %v109 = vld [vmem:[#allocation5 + $0x70] sm:$0xff]
    %v110 = vld [vmem:[#allocation5 + $0x78] sm:$0xff]
    %v111 = vld [vmem:[%s2] sm:$0x1]
    %v113 = vlaneseq
    %v114 = vshrl.u32 %v113, 7
    %v115 = vsub.s32 0, %v114
    %v116 = vrot.slane %v111, %v115
    %118 = vmatprep.subr.mxu0 0.0
    %119 = vmatpush1.msra.mxu0 %v95
    %120 = vmatprep.subr.mxu0 0.0
    %121 = vmatpush1.msra.mxu0 %v96
    %122 = vmatprep.subr.mxu0 0.0
    %123 = vmatpush1.msra.mxu0 %v97
    %124 = vmatprep.subr.mxu0 0.0
    %125 = vmatpush1.msra.mxu0 %v98
    %126 = vmatprep.subr.mxu0 0.0
    %127 = vmatpush1.msra.mxu0 %v99
    %128 = vmatprep.subr.mxu0 0.0
    %129 = vmatpush1.msra.mxu0 %v100
    %130 = vmatprep.subr.mxu0 0.0
    %131 = vmatpush1.msra.mxu0 %v101
    %132 = vmatprep.subr.mxu0 0.0
    %133 = vmatpush1.msra.mxu0 %v102
    %134 = vmatprep.subr.mxu0 0.0
    %135 = vmatpush1.msra.mxu0 %v103
    %136 = vmatprep.subr.mxu0 0.0
    %137 = vmatpush1.msra.mxu0 %v104
    %138 = vmatprep.subr.mxu0 0.0
    %139 = vmatpush1.msra.mxu0 %v105
    %140 = vmatprep.subr.mxu0 0.0
    %141 = vmatpush1.msra.mxu0 %v106
    %142 = vmatprep.subr.mxu0 0.0
    %143 = vmatpush1.msra.mxu0 %v107
    %144 = vmatprep.subr.mxu0 0.0
    %145 = vmatpush1.msra.mxu0 %v108
    %146 = vmatprep.subr.mxu0 0.0
    %147 = vmatpush1.msra.mxu0 %v109
    %148 = vmatprep.subr.mxu0 0.0
    %149 = vmatpush1.msra.mxu0 %v110
    %150 = vmatprep.subr.mxu0 0.0
    %151 = vmatpush1.msra.mxu0 0.0
    %152 = vmatprep.subr.mxu0 0.0
    %153 = vmatpush1.msra.mxu0 0.0
    %154 = vmatprep.subr.mxu0 0.0
    %155 = vmatpush1.msra.mxu0 0.0
    %156 = vmatprep.subr.mxu0 0.0
    %157 = vmatpush1.msra.mxu0 0.0
    %158 = vmatprep.subr.mxu0 0.0
    %159 = vmatpush1.msra.mxu0 0.0
    %160 = vmatprep.subr.mxu0 0.0
    %161 = vmatpush1.msra.mxu0 0.0
    %162 = vmatprep.subr.mxu0 0.0
    %163 = vmatpush1.msra.mxu0 0.0
    %164 = vmatprep.subr.mxu0 0.0
    %165 = vmatpush1.msra.mxu0 0.0
    %166 = vmatprep.subr.mxu0 0.0
    %167 = vmatpush1.msra.mxu0 0.0
    %168 = vmatprep.subr.mxu0 0.0
    %169 = vmatpush1.msra.mxu0 0.0
    %170 = vmatprep.subr.mxu0 0.0
    %171 = vmatpush1.msra.mxu0 0.0
    %172 = vmatprep.subr.mxu0 0.0
    %173 = vmatpush1.msra.mxu0 0.0
    %174 = vmatprep.subr.mxu0 0.0
    %175 = vmatpush1.msra.mxu0 0.0
    %176 = vmatprep.subr.mxu0 0.0
    %177 = vmatpush1.msra.mxu0 0.0
    %178 = vmatprep.subr.mxu0 0.0
    %179 = vmatpush1.msra.mxu0 0.0
    %180 = vmatprep.subr.mxu0 0.0
    %181 = vmatpush1.msra.mxu0 0.0
    %182 = vmatprep.mubr.f32.mxu0 0.0
    %183 = vmatmul.mubr.f32.gmra.mrb[0].mxu0 %v94
    %v184 = vpop.f32.mrb[0].mxu0
    %v185 = vadd.f32 %v116, %v184
    %v186 = vpop.f32.mrb[0].mxu0
    %187 = vdwg.mxu0
    %v188 = vmax.f32 %v185, 0.0
    %v189 = vld [vmem:[#allocation7] sm:$0xff]
    %v190 = vld [vmem:[#allocation7 + $0x8] sm:$0xff]
    %v191 = vld [vmem:[#allocation7 + $0x10] sm:$0xff]
    %v192 = vld [vmem:[#allocation7 + $0x18] sm:$0xff]
    %v193 = vld [vmem:[#allocation7 + $0x20] sm:$0xff]
    %v194 = vld [vmem:[#allocation7 + $0x28] sm:$0xff]
    %v195 = vld [vmem:[#allocation7 + $0x30] sm:$0xff]
    %v196 = vld [vmem:[#allocation7 + $0x38] sm:$0xff]
    %v197 = vld [vmem:[#allocation7 + $0x40] sm:$0xff]
    %v198 = vld [vmem:[#allocation7 + $0x48] sm:$0xff]
    %v199 = vld [vmem:[#allocation7 + $0x50] sm:$0xff]
    %v200 = vld [vmem:[#allocation7 + $0x58] sm:$0xff]
    %v201 = vld [vmem:[#allocation7 + $0x60] sm:$0xff]
    %v202 = vld [vmem:[#allocation7 + $0x68] sm:$0xff]
    %v203 = vld [vmem:[#allocation7 + $0x70] sm:$0xff]
    %v204 = vld [vmem:[#allocation7 + $0x78] sm:$0xff]
    %v205 = vld [vmem:[%s4] sm:$0x1]
    %v207 = vlaneseq
    %v208 = vshrl.u32 %v207, 7
    %v209 = vsub.s32 0, %v208
    %v210 = vrot.slane %v205, %v209
    %212 = vmatprep.subr.mxu0 0.0
    %213 = vmatpush1.msra.mxu0 %v189
    %214 = vmatprep.subr.mxu0 0.0
    %215 = vmatpush1.msra.mxu0 %v190
    %216 = vmatprep.subr.mxu0 0.0
    %217 = vmatpush1.msra.mxu0 %v191
    %218 = vmatprep.subr.mxu0 0.0
    %219 = vmatpush1.msra.mxu0 %v192
    %220 = vmatprep.subr.mxu0 0.0
    %221 = vmatpush1.msra.mxu0 %v193
    %222 = vmatprep.subr.mxu0 0.0
    %223 = vmatpush1.msra.mxu0 %v194
    %224 = vmatprep.subr.mxu0 0.0
    %225 = vmatpush1.msra.mxu0 %v195
    %226 = vmatprep.subr.mxu0 0.0
    %227 = vmatpush1.msra.mxu0 %v196
    %228 = vmatprep.subr.mxu0 0.0
    %229 = vmatpush1.msra.mxu0 %v197
    %230 = vmatprep.subr.mxu0 0.0
    %231 = vmatpush1.msra.mxu0 %v198
    %232 = vmatprep.subr.mxu0 0.0
    %233 = vmatpush1.msra.mxu0 %v199
    %234 = vmatprep.subr.mxu0 0.0
    %235 = vmatpush1.msra.mxu0 %v200
    %236 = vmatprep.subr.mxu0 0.0
    %237 = vmatpush1.msra.mxu0 %v201
    %238 = vmatprep.subr.mxu0 0.0
    %239 = vmatpush1.msra.mxu0 %v202
    %240 = vmatprep.subr.mxu0 0.0
    %241 = vmatpush1.msra.mxu0 %v203
    %242 = vmatprep.subr.mxu0 0.0
    %243 = vmatpush1.msra.mxu0 %v204
    %244 = vmatprep.subr.mxu0 0.0
    %245 = vmatpush1.msra.mxu0 0.0
    %246 = vmatprep.subr.mxu0 0.0
    %247 = vmatpush1.msra.mxu0 0.0
    %248 = vmatprep.subr.mxu0 0.0
    %249 = vmatpush1.msra.mxu0 0.0
    %250 = vmatprep.subr.mxu0 0.0
    %251 = vmatpush1.msra.mxu0 0.0
    %252 = vmatprep.subr.mxu0 0.0
    %253 = vmatpush1.msra.mxu0 0.0
    %254 = vmatprep.subr.mxu0 0.0
    %255 = vmatpush1.msra.mxu0 0.0
    %256 = vmatprep.subr.mxu0 0.0
    %257 = vmatpush1.msra.mxu0 0.0
    %258 = vmatprep.subr.mxu0 0.0
    %259 = vmatpush1.msra.mxu0 0.0
    %260 = vmatprep.subr.mxu0 0.0
    %261 = vmatpush1.msra.mxu0 0.0
    %262 = vmatprep.subr.mxu0 0.0
    %263 = vmatpush1.msra.mxu0 0.0
    %264 = vmatprep.subr.mxu0 0.0
    %265 = vmatpush1.msra.mxu0 0.0
    %266 = vmatprep.subr.mxu0 0.0
    %267 = vmatpush1.msra.mxu0 0.0
    %268 = vmatprep.subr.mxu0 0.0
    %269 = vmatpush1.msra.mxu0 0.0
    %270 = vmatprep.subr.mxu0 0.0
    %271 = vmatpush1.msra.mxu0 0.0
    %272 = vmatprep.subr.mxu0 0.0
    %273 = vmatpush1.msra.mxu0 0.0
    %274 = vmatprep.subr.mxu0 0.0
    %275 = vmatpush1.msra.mxu0 0.0
    %276 = vmatprep.mubr.f32.mxu0 0.0
    %277 = vmatmul.mubr.f32.gmra.mrb[0].mxu0 %v188
    %v278 = vpop.f32.mrb[0].mxu0
    %v279 = vadd.f32 %v210, %v278
    %v280 = vpop.f32.mrb[0].mxu0
    %281 = vdwg.mxu0
    %282 = vmatprep.subr.mxu0 0.0
    %283 = vmatpush1.msra.mxu0 %v78
    %284 = vmatprep.subr.mxu0 0.0
    %285 = vmatpush1.msra.mxu0 %v79
    %286 = vmatprep.subr.mxu0 0.0
    %287 = vmatpush1.msra.mxu0 %v80
    %288 = vmatprep.subr.mxu0 0.0
    %289 = vmatpush1.msra.mxu0 %v81
    %290 = vmatprep.subr.mxu0 0.0
    %291 = vmatpush1.msra.mxu0 %v82
    %292 = vmatprep.subr.mxu0 0.0
    %293 = vmatpush1.msra.mxu0 %v83
    %294 = vmatprep.subr.mxu0 0.0
    %295 = vmatpush1.msra.mxu0 %v84
    %296 = vmatprep.subr.mxu0 0.0
    %297 = vmatpush1.msra.mxu0 %v85
    %298 = vmatprep.subr.mxu0 0.0
    %299 = vmatpush1.msra.mxu0 %v86
    %300 = vmatprep.subr.mxu0 0.0
    %301 = vmatpush1.msra.mxu0 %v87
    %302 = vmatprep.subr.mxu0 0.0
    %303 = vmatpush1.msra.mxu0 %v88
    %304 = vmatprep.subr.mxu0 0.0
    %305 = vmatpush1.msra.mxu0 %v89
    %306 = vmatprep.subr.mxu0 0.0
    %307 = vmatpush1.msra.mxu0 %v90
    %308 = vmatprep.subr.mxu0 0.0
    %309 = vmatpush1.msra.mxu0 %v91
    %310 = vmatprep.subr.mxu0 0.0
    %311 = vmatpush1.msra.mxu0 %v92
    %312 = vmatprep.subr.mxu0 0.0
    %313 = vmatpush1.msra.mxu0 %v93
    %314 = vmatprep.subr.mxu0 0.0
    %315 = vmatpush1.msra.mxu0 0.0
    %316 = vmatprep.subr.mxu0 0.0
    %317 = vmatpush1.msra.mxu0 0.0
    %318 = vmatprep.subr.mxu0 0.0
    %319 = vmatpush1.msra.mxu0 0.0
    %320 = vmatprep.subr.mxu0 0.0
    %321 = vmatpush1.msra.mxu0 0.0
    %322 = vmatprep.subr.mxu0 0.0
    %323 = vmatpush1.msra.mxu0 0.0
    %324 = vmatprep.subr.mxu0 0.0
    %325 = vmatpush1.msra.mxu0 0.0
    %326 = vmatprep.subr.mxu0 0.0
    %327 = vmatpush1.msra.mxu0 0.0
    %328 = vmatprep.subr.mxu0 0.0
    %329 = vmatpush1.msra.mxu0 0.0
    %330 = vmatprep.subr.mxu0 0.0
    %331 = vmatpush1.msra.mxu0 0.0
    %332 = vmatprep.subr.mxu0 0.0
    %333 = vmatpush1.msra.mxu0 0.0
    %334 = vmatprep.subr.mxu0 0.0
    %335 = vmatpush1.msra.mxu0 0.0
    %336 = vmatprep.subr.mxu0 0.0
    %337 = vmatpush1.msra.mxu0 0.0
    %338 = vmatprep.subr.mxu0 0.0
    %339 = vmatpush1.msra.mxu0 0.0
    %340 = vmatprep.subr.mxu0 0.0
    %341 = vmatpush1.msra.mxu0 0.0
    %342 = vmatprep.subr.mxu0 0.0
    %343 = vmatpush1.msra.mxu0 0.0
    %344 = vmatprep.subr.mxu0 0.0
    %345 = vmatpush1.msra.mxu0 0.0
    %346 = vmatprep.mubr.f32.mxu0 0.0
    %347 = vmatmul.mubr.f32.gmra.mrb[0].mxu0 %v77
    %v348 = vpop.f32.mrb[0].mxu0
    %v349 = vadd.f32 %v279, %v348
    %v350 = vpop.f32.mrb[0].mxu0
    %351 = vdwg.mxu0
    %352 = vst [vmem:[#allocation10] sm:$0xff] %v349
    // Predicated region
    $region42: #{tpu_custom_call.1} parent=1 // pred_check
      _
    $region43: #{tpu_custom_call.1} parent=1 // pred_check_branch
      %354 = sbr.rel (0) target = $region45
    $region44: #{tpu_custom_call.1} parent=1 // pred_region
      %s356 = ssub.s32 128, 128
      %357 = vsyncadd [#allocation4], %s356
      %s359 = sshll.u32 [#allocation10], 4
      %s360 = int_to_ptr.vmem [resolvable:$true] %s359
      %362 = dma.vmem_to_hbm [thread:$0]  %s360, 128, %s6, [#allocation4]
    $region45: #{tpu_custom_call.1} parent=1 // pred_fallthru
      _
    // Predicated region
    $region46: #{tpu_custom_call.1} parent=1 // pred_check
      _
    $region47: #{tpu_custom_call.1} parent=1 // pred_check_branch
      %364 = sbr.rel (0) target = $region49
    $region48: #{tpu_custom_call.1} parent=1 // pred_region
      %365 = dma.done [#allocation4], 128
    $region49: #{tpu_custom_call.1} parent=1 // pred_fallthru
      _
    %366 = vsyncpa [#allocation3], 1
    %367 = vsyncpa [#allocation6], 1
    %368 = vsyncpa [#allocation9], 1
    %369 = vsyncpa [#allocation4], 1

</llo_original>
